<compile_context>
chip_gen: v7x
topology: tpu7x:2x2x1
jax: 0.10.0
libtpu: 0.0.40
codegen_flags: <defaults>
</compile_context>

<pallas_src>
import functools

import jax
import jax.numpy as jnp
import numpy as np
from jax import lax
from jax.experimental import pallas as pl
from jax.experimental.pallas import tpu as pltpu


# -----------------------------------------------------------------------------
# pltpu.roll direction probe (run eagerly, once, before tracing the main call)
# -----------------------------------------------------------------------------
def _detect_roll_matches_jnp():
    """True iff pltpu.roll(x, s, axis) has the same semantics as jnp.roll."""
    def probe(x_ref, o_ref):
        o_ref[...] = pltpu.roll(x_ref[...], 1, 1)

    x = jnp.arange(4 * 256, dtype=jnp.float32).reshape(4, 256)
    y = pl.pallas_call(
        probe, out_shape=jax.ShapeDtypeStruct((4, 256), jnp.float32))(x)
    # jnp.roll(x, 1, 1)[0, 0] == x[0, 255] == 255.
    return bool(float(jax.device_get(y)[0, 0]) == 255.0)


# -----------------------------------------------------------------------------
# The fused kernel: the entire Memnet2_2 forward for ONE image per grid step
# -----------------------------------------------------------------------------
def _memnet2_kernel(x_ref, mask_ref, wc_ref, bc_ref, w4_ref, b4_ref,
                    w3_ref, b3_ref, w2_ref, b2_ref, alpha_ref, o_ref,
                    *, width, roll_matches_jnp):
    C = x_ref.shape[1]
    HW = x_ref.shape[2]
    x0 = x_ref[0]                      # (C, HW)   lane-dense activations
    alpha = alpha_ref[...]             # (1, 1)    shared PReLU slope
    mask = mask_ref[...]               # (9C, HW)  tap-validity mask (hoisted)

    def shifted(v, off):
        # out[:, p] = v[:, p + off]  (wrap-around positions masked afterwards)
        if off == 0:
            return v
        sh = (-off) % HW if roll_matches_jnp else off % HW
        return pltpu.roll(v, sh, 1)

    def conv3x3_prelu(v, conv_idx):
        # 9 shifted taps -> one (9C, HW) slab -> single MXU dot with (C, 9C).
        taps = [shifted(v, (t // 3 - 1) * width + (t % 3 - 1)) for t in range(9)]
        stk = jnp.concatenate(taps, axis=0) * mask
        y = jnp.dot(wc_ref[conv_idx], stk, preferred_element_type=jnp.float32)
        y = y + bc_ref[conv_idx]                         # (C, 1) bias
        return jnp.where(y >= 0.0, y, alpha * y)         # shared PReLU

    def memnet4(idx4, xin):
        res = xin
        feats = []
        for k in range(5):                               # 5 convs, unrolled
            res = conv3x3_prelu(res, idx4 * 5 + k)
            feats.append(res)
        cat = jnp.concatenate(feats, axis=0)             # (5C, HW)
        y = jnp.dot(w4_ref[idx4], cat, preferred_element_type=jnp.float32)
        return y + b4_ref[idx4] + xin                    # lff bias + residual

    def memnet3(i2, xin):
        def body3(i3, carry):
            res3, acc3 = carry
            r = memnet4(i2 * 5 + i3, res3)
            acc3 = acc3 + jnp.dot(w3_ref[i2 * 5 + i3], r,
                                  preferred_element_type=jnp.float32)
            return r, acc3

        _, acc3 = lax.fori_loop(0, 5, body3,
                                (xin, jnp.zeros((C, HW), jnp.float32)))
        return acc3 + b3_ref[i2] + xin

    def body2(i2, carry):
        res2, acc2 = carry
        r = memnet3(i2, res2)
        acc2 = acc2 + jnp.dot(w2_ref[i2], r,
                              preferred_element_type=jnp.float32)
        return r, acc2

    _, acc2 = lax.fori_loop(0, 5, body2,
                            (x0, jnp.zeros((C, HW), jnp.float32)))
    o_ref[0] = (acc2 + b2_ref[...] + x0).astype(o_ref.dtype)


# -----------------------------------------------------------------------------
# Wrapper
# -----------------------------------------------------------------------------
def _make_tap_mask_stack(H, W, C):
    """(9*C, H*W) validity mask for the 9 shifted taps (emulates zero pad)."""
    p = np.arange(H * W)
    h, w = p // W, p % W
    m = np.zeros((9, H * W), np.float32)
    for t in range(9):
        sy, sx = t // 3 - 1, t % 3 - 1
        m[t] = ((h + sy >= 0) & (h + sy < H) &
                (w + sx >= 0) & (w + sx < W)).astype(np.float32)
    return jnp.asarray(np.repeat(m, C, axis=0))


def memnet2_forward(params, x_nchw, *, roll_matches_jnp=True):
    """Memnet2_2 forward.  x_nchw: (N, C, H, W) float32 (PyTorch layout)."""
    N, C, H, W = x_nchw.shape
    HW = H * W
    x = x_nchw.reshape(N, C, HW).astype(jnp.float32)
    mask = _make_tap_mask_stack(H, W, C)

    # Repack weights into the kernel-native stacked layouts (pure reshapes /
    # transposes, done once outside the kernel).
    wcat = jnp.transpose(params["wc"], (0, 2, 1, 3)).reshape(125, C, 9 * C)
    bcr = params["bc"].reshape(125, C, 1)
    w4 = params["w4l"]                                        # (25, C, 5C)
    b4r = params["b4l"].reshape(25, C, 1)
    w3blk = (params["w3l"].reshape(5, C, 5, C)
             .transpose(0, 2, 1, 3).reshape(25, C, C))        # (25, C, C)
    b3r = params["b3l"].reshape(5, C, 1)
    w2blk = params["w2l"].reshape(C, 5, C).transpose(1, 0, 2)  # (5, C, C)
    b2r = params["b2l"].reshape(C, 1)
    alpha = params["alpha"]

    kernel = functools.partial(_memnet2_kernel, width=W,
                               roll_matches_jnp=roll_matches_jnp)
    # TODO(synk): for large H*W, add a row-band spatial grid axis with a
    # 1-pixel halo so whole-image blocks never exceed v7x's 64 MiB VMEM.
    out = pl.pallas_call(
        kernel,
        out_shape=jax.ShapeDtypeStruct((N, C, HW), jnp.float32),
        grid=(N,),
        in_specs=[
            pl.BlockSpec((1, C, HW), lambda n: (n, 0, 0)),        # x (one image)
            pl.BlockSpec((9 * C, HW), lambda n: (0, 0)),          # tap mask stack
            pl.BlockSpec((125, C, 9 * C), lambda n: (0, 0, 0)),   # conv weights
            pl.BlockSpec((125, C, 1), lambda n: (0, 0, 0)),       # conv biases
            pl.BlockSpec((25, C, 5 * C), lambda n: (0, 0, 0)),    # lff4 weights
            pl.BlockSpec((25, C, 1), lambda n: (0, 0, 0)),        # lff4 biases
            pl.BlockSpec((25, C, C), lambda n: (0, 0, 0)),        # lff3 blocks
            pl.BlockSpec((5, C, 1), lambda n: (0, 0, 0)),         # lff3 biases
            pl.BlockSpec((5, C, C), lambda n: (0, 0, 0)),         # lff2 blocks
            pl.BlockSpec((C, 1), lambda n: (0, 0)),               # lff2 bias
            pl.BlockSpec((1, 1), lambda n: (0, 0)),               # PReLU alpha
        ],
        out_specs=pl.BlockSpec((1, C, HW), lambda n: (n, 0, 0)),
        compiler_params=pltpu.CompilerParams(
            dimension_semantics=("parallel",),
            vmem_limit_bytes=32 * 1024 * 1024),
    )(x, mask, wcat, bcr, w4, b4r, w3blk, b3r, w2blk, b2r, alpha)
    return out.reshape(N, C, H, W)


# -----------------------------------------------------------------------------
# Deterministic synthetic parameters
# -----------------------------------------------------------------------------
def init_params(key, C, scale=0.05):
    ks = jax.random.split(key, 8)
    return {
        # 125 convs x 9 taps, each (Cout, Cin); tap t = kernel pos (t//3, t%3)
        "wc": scale * jax.random.normal(ks[0], (125, 9, C, C), jnp.float32),
        "bc": scale * jax.random.normal(ks[1], (125, C), jnp.float32),
        # level-4 lff: (Cout, 5*Cin) over the 5-way channel concat
        "w4l": scale * jax.random.normal(ks[2], (25, C, 5 * C), jnp.float32),
        "b4l": scale * jax.random.normal(ks[3], (25, C), jnp.float32),
        "w3l": scale * jax.random.normal(ks[4], (5, C, 5 * C), jnp.float32),
        "b3l": scale * jax.random.normal(ks[5], (5, C), jnp.float32),
        "w2l": scale * jax.random.normal(ks[6], (C, 5 * C), jnp.float32),
        "b2l": scale * jax.random.normal(ks[7], (C,), jnp.float32),
        # single shared PReLU slope (num_parameters=1, init=0.25)
        "alpha": jnp.full((1, 1), 0.25, jnp.float32),
    }


# -----------------------------------------------------------------------------
# Pure-JAX reference (mirrors the PyTorch forward: explicit concat + 1x1 lff)
# -----------------------------------------------------------------------------
def _ref_conv3x3_prelu(x, w9, b, alpha):
    # x: (N,C,H,W); w9: (9, Cout, Cin); b: (C,)
    C = x.shape[1]
    w = jnp.transpose(w9, (1, 2, 0)).reshape(C, C, 3, 3)        # OIHW
    y = lax.conv_general_dilated(
        x, w, window_strides=(1, 1), padding=((1, 1), (1, 1)),
        dimension_numbers=("NCHW", "OIHW", "NCHW"))
    y = y + b.reshape(1, C, 1, 1)
    a = alpha.reshape(())
    return jnp.where(y >= 0.0, y, a * y)


def _ref_lff(Wm, b, feats):
    # Wm: (Cout, 5*Cin); feats: list of 5 (N,C,H,W)
    cat = jnp.concatenate(feats, axis=1)                        # (N, 5C, H, W)
    y = jnp.einsum("oc,nchw->nohw", Wm, cat)
    return y + b.reshape(1, -1, 1, 1)


def memnet2_reference(params, x):
    alpha = params["alpha"]
    res2, feats2 = x, []
    for i2 in range(5):
        x3 = res2
        res3, feats3 = x3, []
        for i3 in range(5):
            idx4 = i2 * 5 + i3
            x4 = res3
            res4, feats4 = x4, []
            for k in range(5):
                l = idx4 * 5 + k
                res4 = _ref_conv3x3_prelu(res4, params["wc"][l],
                                          params["bc"][l], alpha)
                feats4.append(res4)
            res3 = _ref_lff(params["w4l"][idx4], params["b4l"][idx4],
                            feats4) + x4
            feats3.append(res3)
        res2 = _ref_lff(params["w3l"][i2], params["b3l"][i2], feats3) + x3
        feats2.append(res2)
    return _ref_lff(params["w2l"], params["b2l"], feats2) + x


# -----------------------------------------------------------------------------
if __name__ == "__main__":
    key = jax.random.PRNGKey(0)
    kp, kx = jax.random.split(key)

    N, C, H, W = 2, 4, 16, 16                       # batch, n_feats, spatial
    params = init_params(kp, C)
    x = jax.random.normal(kx, (N, C, H, W), jnp.float32)   # NCHW like PyTorch

    roll_ok = _detect_roll_matches_jnp()            # tiny eager probe kernel
    fwd = jax.jit(functools.partial(memnet2_forward, roll_matches_jnp=roll_ok))
    out = jax.block_until_ready(fwd(params, x))

    ref = jax.block_until_ready(jax.jit(memnet2_reference)(params, x))
    np.testing.assert_allclose(np.asarray(out), np.asarray(ref),
                               atol=3e-3, rtol=3e-3)
    assert out.shape == (N, C, H, W)
    print("KERNEL_OK")
</pallas_src>

<mosaic_0001>
module attributes {stable_mosaic.version = 11 : i64} {
  func.func @probe(%arg0: memref<4x256xf32, #tpu.memory_space<vmem>>, %arg1: memref<4x256xf32, #tpu.memory_space<vmem>>) attributes {dimension_semantics = [], scalar_prefetch = 0 : i64, scratch_operands = 0 : i64, tpu.core_type = #tpu.core_type<tc>} {
    %c0 = arith.constant 0 : index
    %c0_0 = arith.constant 0 : index
    %0 = vector.load %arg0[%c0, %c0_0] : memref<4x256xf32, #tpu.memory_space<vmem>>, vector<4x256xf32>
    %c1_i32 = arith.constant 1 : i32
    %1 = tpu.dynamic_rotate %0 by %c1_i32 dim 1 : vector<4x256xf32>, i32 -> vector<4x256xf32>
    %c0_1 = arith.constant 0 : index
    %c0_2 = arith.constant 0 : index
    %2 = vector.load %arg1[%c0_1, %c0_2] : memref<4x256xf32, #tpu.memory_space<vmem>>, vector<4x256xf32>
    tpu.vector_store %arg1[%c0_1, %c0_2], %1 {strides = array<i32>} : memref<4x256xf32, #tpu.memory_space<vmem>>, vector<4x256xf32>,
    return
  }
}

</mosaic_0001>

<llo_original>
// kernel: tpu_custom_call.1
$region0: #{tpu_custom_call.1}
  #allocation0 [shape = 'u32[]', space=smem, size = 0x4, offset = 0x4, fixed_abs, tag = 'smem constant byte address 0x4 - core index']
  #allocation1 [shape = 'u32[144,128]{1,0:T(1,128)}', space=vmem, size = 0x12000, scoped, tag = 'internal scratch']
  %s0 = inlined_call_operand.hbm [shape: f32[4,256], index: 0, kind: input, shape index: {}]
  %s1 = inlined_call_operand.hbm [shape: f32[4,256], index: 1, kind: output, shape index: {}]
  %s2 = sld [smem:[#allocation0]]
  $region18: #{tpu_custom_call.1} parent=0
    _
  %s4 = ssub.s32 1, %s2
  %s5 = scalar_select 0, %s4, %s2
  $region1: #{tpu_custom_call.1} parent=0
    #allocation2 [shape = 'u8[4096]{0}', space=vmem, size = 0x1000, scoped, tag = 'input window, operand 0, single buffered']
    #allocation3 [shape = 's32[1]{0}', space=sflag, size = 0x4, scoped, tag = 'scoped memory for tpu_custom_call.1']
    #allocation4 [shape = 's32[1]{0}', space=sflag, size = 0x4, scoped, tag = 'scoped memory for tpu_custom_call.1']
    #allocation5 [shape = 'u8[4096]{0}', space=vmem, size = 0x1000, scoped, tag = 'output window, operand 0, single buffered']
    %6 = vsyncpa [#allocation3], 0
    %7 = vsyncpa [#allocation4], 0
    // Predicated region
    $region2: #{tpu_custom_call.1} parent=1 // pred_check
      _
    $region3: #{tpu_custom_call.1} parent=1 // pred_check_branch
      %9 = sbr.rel (0) target = $region5
    $region4: #{tpu_custom_call.1} parent=1 // pred_region
      %s11 = ssub.s32 128, 128
      %12 = vsyncadd [#allocation3], %s11
      %s14 = sshll.u32 [#allocation2], 4
      %s15 = int_to_ptr.vmem [resolvable:$true] %s14
      %17 = dma.hbm_to_vmem [thread:$0]  %s0, 128, %s15, [#allocation3]
    $region5: #{tpu_custom_call.1} parent=1 // pred_fallthru
      _
    // Predicated region
    $region6: #{tpu_custom_call.1} parent=1 // pred_check
      _
    $region7: #{tpu_custom_call.1} parent=1 // pred_check_branch
      %19 = sbr.rel (0) target = $region9
    $region8: #{tpu_custom_call.1} parent=1 // pred_region
      %20 = dma.done [#allocation3], 128
    $region9: #{tpu_custom_call.1} parent=1 // pred_fallthru
      _
    %v21 = vld [vmem:[#allocation2] sm:$0xff]
    %v23 = vcombine.high %v21, %v21
    %25 = vrot.lane.b32.xlu0 %v21, 1
    %v26 = vpop.permute.xlu0 %25
    %27 = vrot.lane.b32.xlu0 %v23, 1
    %v28 = vpop.permute.xlu0 %27
    %v29 = vlaneseq
    %v30 = vand.u32 %v29, 127
    %vm31 = vcmp.lt.s32.totalorder %v30, 1
    %v32 = vsel %vm31, %v26, %v28
    %v33 = vsel %vm31, %v28, %v26
    %v36 = vcombine.low %v33, %v32
    %38 = vst [vmem:[#allocation5] sm:$0xff] %v36
    // Predicated region
    $region10: #{tpu_custom_call.1} parent=1 // pred_check
      _
    $region11: #{tpu_custom_call.1} parent=1 // pred_check_branch
      %40 = sbr.rel (0) target = $region13
    $region12: #{tpu_custom_call.1} parent=1 // pred_region
      %s42 = ssub.s32 128, 128
      %43 = vsyncadd [#allocation4], %s42
      %s45 = sshll.u32 [#allocation5], 4
      %s46 = int_to_ptr.vmem [resolvable:$true] %s45
      %48 = dma.vmem_to_hbm [thread:$0]  %s46, 128, %s1, [#allocation4]
    $region13: #{tpu_custom_call.1} parent=1 // pred_fallthru
      _
    // Predicated region
    $region14: #{tpu_custom_call.1} parent=1 // pred_check
      _
    $region15: #{tpu_custom_call.1} parent=1 // pred_check_branch
      %50 = sbr.rel (0) target = $region17
    $region16: #{tpu_custom_call.1} parent=1 // pred_region
      %51 = dma.done [#allocation4], 128
    $region17: #{tpu_custom_call.1} parent=1 // pred_fallthru
      _
    %52 = vsyncpa [#allocation3], 1
    %53 = vsyncpa [#allocation4], 1

</llo_original>
